<compile_context>
chip_gen: v7x
topology: tpu7x:2x2x1
jax: 0.10.0
libtpu: 0.0.40
codegen_flags: <defaults>
</compile_context>

<pallas_src>
import functools

import jax
import jax.numpy as jnp
from jax import lax
from jax.experimental import pallas as pl
from jax.experimental.pallas import tpu as pltpu


def _round_up(x, m):
    return ((x + m - 1) // m) * m


# --------------------------------------------------------------------------
# Kernel
# --------------------------------------------------------------------------
def _features_linear_kernel(idx_ref, emb_ref, bias_ref, out_ref, *,
                            field_lo, field_hi):
    """Transposed, lane-dense FeaturesLinear tile.

    idx_ref : (F, TB)        int32  raw field indices (batch on lanes)
    emb_ref : (d_pad, TV)    emb.T window for vocab rows [v*TV, (v+1)*TV)
    bias_ref: (d_pad, 1)     f32
    out_ref : (d_pad, TB)    f32    resident accumulator across vocab windows
    field_lo/field_hi: static Python ints, per-field global vocab row ranges.
    """
    v = pl.program_id(1)                       # vocab-window index (reduction)
    F, TB = idx_ref.shape
    TV = emb_ref.shape[1]
    win_lo = v * TV                            # first global row of the window

    @pl.when(v == 0)
    def _init():
        out_ref[...] = jnp.broadcast_to(bias_ref[...], out_ref.shape)

    for f in range(F):                         # F small & static -> unrolled
        lo = field_lo[f]
        hi = field_hi[f]

        # Field f can only hit rows in [lo, hi): skip windows it can't touch.
        @pl.when(jnp.logical_and(win_lo < hi, win_lo + TV > lo))
        def _accum(f=f, lo=lo):
            emb_blk = emb_ref[...]                                  # (d_pad, TV)
            # Global row hit by field f is idx + lo; localize to this window.
            local = idx_ref[f:f + 1, :] + (lo - win_lo)             # (1, TB)
            onehot = (local == lax.broadcasted_iota(
                jnp.int32, (TV, TB), 0)).astype(emb_blk.dtype)      # (TV, TB)
            out_ref[...] += jnp.dot(emb_blk, onehot,
                                    preferred_element_type=jnp.float32)


# --------------------------------------------------------------------------
# Wrapper
# --------------------------------------------------------------------------
def features_linear(x, field_dims, emb, bias, *, block_b=None, block_v=None):
    """x: (B, F) int; field_dims: static Python ints (len F, sum == V);
    emb: (V, D); bias: (D,).  Returns (B, D) f32 = sum_f emb[x + offsets] + bias.
    """
    B, F = x.shape
    V, D = emb.shape
    field_dims = tuple(int(d) for d in field_dims)
    assert len(field_dims) == F, "x must have one column per field"
    assert sum(field_dims) == V, "embedding rows must equal sum(field_dims)"

    # Static per-field vocab ranges (torch offsets = exclusive cumsum).
    field_lo, acc = [], 0
    for d in field_dims:
        field_lo.append(acc)
        acc += d
    field_lo = tuple(field_lo)
    field_hi = tuple(lo + d for lo, d in zip(field_lo, field_dims))

    # ---- tile selection -------------------------------------------------
    if block_b is None:
        if B <= 128:
            block_b = B
        else:
            # >= 2 batch tiles so the "parallel" axis shards across v7x's two
            # TensorCores; cap at 512 to bound the (TV, TB) onehot temporary.
            block_b = min(512, _round_up(-(-B // 2), 128))
    if block_b < B:
        assert block_b % 128 == 0, "batch tile must be a multiple of 128"
    nb = pl.cdiv(B, block_b)

    if block_v is None:
        # 512 keeps per-step temporaries ~1 MiB: fits v5e's 16 MiB scoped VMEM.
        block_v = V if V <= 512 else 512
    nv = pl.cdiv(V, block_v)
    v_pad = nv * block_v
    if nv > 1:
        assert block_v % 128 == 0, "vocab tile must be a multiple of 128"

    d_pad = max(_round_up(D, 8), 8)            # tile-friendly MXU LHS rows

    # ---- lane-dense operand layout --------------------------------------
    idx_t = x.astype(jnp.int32).T                                   # (F, B)
    emb_t = jnp.pad(emb.T, ((0, d_pad - D), (0, v_pad - V)))        # (d_pad, v_pad)
    bias_col = jnp.pad(bias.astype(jnp.float32).reshape(D, 1),
                       ((0, d_pad - D), (0, 0)))                    # (d_pad, 1)

    kernel = functools.partial(_features_linear_kernel,
                               field_lo=field_lo, field_hi=field_hi)

    out_t = pl.pallas_call(
        kernel,
        out_shape=jax.ShapeDtypeStruct((d_pad, B), jnp.float32),
        grid=(nb, nv),                         # batch parallel, vocab reduction
        in_specs=[
            pl.BlockSpec((F, block_b), lambda i, v: (0, i)),        # indices
            pl.BlockSpec((d_pad, block_v), lambda i, v: (0, v)),    # emb window
            pl.BlockSpec((d_pad, 1), lambda i, v: (0, 0)),          # bias
        ],
        out_specs=pl.BlockSpec((d_pad, block_b), lambda i, v: (0, i)),
        compiler_params=pltpu.CompilerParams(
            dimension_semantics=("parallel", "arbitrary")),
    )(idx_t, emb_t, bias_col)

    return out_t[:D, :].T                       # (B, D); reshape-only for D==1


# --------------------------------------------------------------------------
# Demo / self-check
# --------------------------------------------------------------------------
def _reference(x, field_dims, emb, bias):
    offs, acc = [], 0
    for d in field_dims:
        offs.append(acc)
        acc += d
    offsets = jnp.array(offs, dtype=jnp.int32)
    return jnp.sum(jnp.take(emb, x + offsets[None, :], axis=0), axis=1) + bias


def _make_inputs(key, batch, field_dims, output_dim):
    k_emb, k_bias, k_idx = jax.random.split(key, 3)
    vocab = sum(field_dims)
    emb = jax.random.normal(k_emb, (vocab, output_dim), dtype=jnp.float32)
    # torch initializes bias to zeros; use a nonzero value to exercise the path.
    bias = 0.1 * jax.random.normal(k_bias, (output_dim,), dtype=jnp.float32)
    ks = jax.random.split(k_idx, len(field_dims))
    cols = [jax.random.randint(ks[f], (batch,), 0, fd, dtype=jnp.int32)
            for f, fd in enumerate(field_dims)]
    x = jnp.stack(cols, axis=1)                 # (batch, num_fields)
    return x, emb, bias


if __name__ == "__main__":
    field_dims = (96, 64, 80, 100)              # vocab = 340, fields = 4
    key = jax.random.PRNGKey(0)
    k1, k2, k3 = jax.random.split(key, 3)

    # 1) DeepFM case (D=1): 2 parallel batch tiles, 3 vocab windows of 128
    #    (exercises pruning, a field spanning two windows, and a padded tail).
    x1, emb1, bias1 = _make_inputs(k1, 256, field_dims, 1)
    out1 = jax.block_until_ready(
        features_linear(x1, field_dims, emb1, bias1, block_b=128, block_v=128))
    ref1 = _reference(x1, field_dims, emb1, bias1)
    assert out1.shape == (256, 1)
    assert jnp.allclose(out1, ref1, atol=1e-5, rtol=1e-5)

    # 2) D=1, tiny batch, default tiling (single vocab window, single tile).
    x2, emb2, bias2 = _make_inputs(k2, 2, field_dims, 1)
    out2 = jax.block_until_ready(features_linear(x2, field_dims, emb2, bias2))
    ref2 = _reference(x2, field_dims, emb2, bias2)
    assert out2.shape == (2, 1)
    assert jnp.allclose(out2, ref2, atol=1e-5, rtol=1e-5)

    # 3) General output_dim (D=4 -> padded to 8 sublanes), tiled batch + vocab.
    x3, emb3, bias3 = _make_inputs(k3, 256, field_dims, 4)
    out3 = jax.block_until_ready(
        features_linear(x3, field_dims, emb3, bias3, block_v=128))
    ref3 = _reference(x3, field_dims, emb3, bias3)
    assert out3.shape == (256, 4)
    assert jnp.allclose(out3, ref3, atol=1e-5, rtol=1e-5)

    print("KERNEL_OK")
</pallas_src>

<mosaic_0001>
module attributes {stable_mosaic.version = 11 : i64} {
  func.func @_features_linear_kernel(%arg0: i32, %arg1: i32, %arg2: memref<4x128xi32, #tpu.memory_space<vmem>>, %arg3: memref<8x128xf32, #tpu.memory_space<vmem>>, %arg4: memref<8x1xf32, #tpu.memory_space<vmem>>, %arg5: memref<8x128xf32, #tpu.memory_space<vmem>>) attributes {dimension_semantics = [#tpu.dimension_semantics<parallel>, #tpu.dimension_semantics<arbitrary>], iteration_bounds = array<i64: 2, 3>, scalar_prefetch = 0 : i64, scratch_operands = 0 : i64, tpu.core_type = #tpu.core_type<tc>, window_params = [{transform_indices = @transform_0, window_bounds = array<i64: 4, 128>}, {transform_indices = @transform_1, window_bounds = array<i64: 8, 128>}, {pipeline_mode = #tpu.pipeline_mode<synchronous>, transform_indices = @transform_2, window_bounds = array<i64: 8, 1>}, {transform_indices = @transform_3, window_bounds = array<i64: 8, 128>}]} {
    %c128_i32 = arith.constant 128 : i32
    %0 = arith.muli %arg1, %c128_i32 : i32
    %c0_i32 = arith.constant 0 : i32
    %1 = arith.cmpi eq, %arg1, %c0_i32 : i32
    %2 = arith.extui %1 : i1 to i32
    %c0_i32_0 = arith.constant 0 : i32
    %3 = arith.cmpi ne, %2, %c0_i32_0 : i32
    scf.if %3 {
      %c0 = arith.constant 0 : index
      %c0_13 = arith.constant 0 : index
      %28 = vector.load %arg4[%c0, %c0_13] : memref<8x1xf32, #tpu.memory_space<vmem>>, vector<8x1xf32>
      %29 = vector.shape_cast %28 : vector<8x1xf32> to vector<8x1xf32>
      %30 = vector.broadcast %29 : vector<8x1xf32> to vector<8x128xf32>
      %c0_14 = arith.constant 0 : index
      %c0_15 = arith.constant 0 : index
      %31 = vector.load %arg5[%c0_14, %c0_15] : memref<8x128xf32, #tpu.memory_space<vmem>>, vector<8x128xf32>
      tpu.vector_store %arg5[%c0_14, %c0_15], %30 {strides = array<i32>} : memref<8x128xf32, #tpu.memory_space<vmem>>, vector<8x128xf32>,
    } else {
    }
    %c96_i32 = arith.constant 96 : i32
    %4 = arith.cmpi slt, %0, %c96_i32 : i32
    %c128_i32_1 = arith.constant 128 : i32
    %5 = arith.addi %0, %c128_i32_1 : i32
    %c0_i32_2 = arith.constant 0 : i32
    %6 = arith.cmpi sgt, %5, %c0_i32_2 : i32
    %7 = arith.andi %4, %6 : i1
    %8 = arith.extui %7 : i1 to i32
    %c0_i32_3 = arith.constant 0 : i32
    %9 = arith.cmpi ne, %8, %c0_i32_3 : i32
    scf.if %9 {
      %c0 = arith.constant 0 : index
      %c0_13 = arith.constant 0 : index
      %28 = vector.load %arg3[%c0, %c0_13] : memref<8x128xf32, #tpu.memory_space<vmem>>, vector<8x128xf32>
      %c0_14 = arith.constant 0 : index
      %c0_15 = arith.constant 0 : index
      %29 = vector.load %arg2[%c0_14, %c0_15] : memref<4x128xi32, #tpu.memory_space<vmem>>, vector<1x128xi32>
      %c0_i32_16 = arith.constant 0 : i32
      %30 = arith.subi %c0_i32_16, %0 : i32
      %31 = vector.broadcast %30 : i32 to vector<1x128xi32>
      %32 = arith.addi %29, %31 : vector<1x128xi32>
      %33 = tpu.iota {dimensions = array<i32: 0>} : vector<128x128xi32>
      %34 = vector.broadcast %32 : vector<1x128xi32> to vector<128x128xi32>
      %35 = arith.cmpi eq, %34, %33 : vector<128x128xi32>
      %36 = arith.extui %35 : vector<128x128xi1> to vector<128x128xi32>
      %37 = arith.sitofp %36 : vector<128x128xi32> to vector<128x128xf32>
      %c0_17 = arith.constant 0 : index
      %c0_18 = arith.constant 0 : index
      %38 = vector.load %arg5[%c0_17, %c0_18] : memref<8x128xf32, #tpu.memory_space<vmem>>, vector<8x128xf32>
      %cst = arith.constant dense<0.000000e+00> : vector<8x128xf32>
      %39 = tpu.matmul %28, %37, %cst {dimension_numbers = #tpu.dot_dimension_numbers<[1], [0], [0], [1], [0, 0, 1, 1], [], []>} : vector<8x128xf32>, vector<128x128xf32>, vector<8x128xf32> -> vector<8x128xf32>
      %40 = arith.addf %38, %39 : vector<8x128xf32>
      %c0_19 = arith.constant 0 : index
      %c0_20 = arith.constant 0 : index
      %41 = vector.load %arg5[%c0_19, %c0_20] : memref<8x128xf32, #tpu.memory_space<vmem>>, vector<8x128xf32>
      tpu.vector_store %arg5[%c0_19, %c0_20], %40 {strides = array<i32>} : memref<8x128xf32, #tpu.memory_space<vmem>>, vector<8x128xf32>,
    } else {
    }
    %c160_i32 = arith.constant 160 : i32
    %10 = arith.cmpi slt, %0, %c160_i32 : i32
    %c128_i32_4 = arith.constant 128 : i32
    %11 = arith.addi %0, %c128_i32_4 : i32
    %c96_i32_5 = arith.constant 96 : i32
    %12 = arith.cmpi sgt, %11, %c96_i32_5 : i32
    %13 = arith.andi %10, %12 : i1
    %14 = arith.extui %13 : i1 to i32
    %c0_i32_6 = arith.constant 0 : i32
    %15 = arith.cmpi ne, %14, %c0_i32_6 : i32
    scf.if %15 {
      %c0 = arith.constant 0 : index
      %c0_13 = arith.constant 0 : index
      %28 = vector.load %arg3[%c0, %c0_13] : memref<8x128xf32, #tpu.memory_space<vmem>>, vector<8x128xf32>
      %c1 = arith.constant 1 : index
      %c0_14 = arith.constant 0 : index
      %29 = vector.load %arg2[%c1, %c0_14] : memref<4x128xi32, #tpu.memory_space<vmem>>, vector<1x128xi32>
      %c96_i32_15 = arith.constant 96 : i32
      %30 = arith.subi %c96_i32_15, %0 : i32
      %31 = vector.broadcast %30 : i32 to vector<1x128xi32>
      %32 = arith.addi %29, %31 : vector<1x128xi32>
      %33 = tpu.iota {dimensions = array<i32: 0>} : vector<128x128xi32>
      %34 = vector.broadcast %32 : vector<1x128xi32> to vector<128x128xi32>
      %35 = arith.cmpi eq, %34, %33 : vector<128x128xi32>
      %36 = arith.extui %35 : vector<128x128xi1> to vector<128x128xi32>
      %37 = arith.sitofp %36 : vector<128x128xi32> to vector<128x128xf32>
      %c0_16 = arith.constant 0 : index
      %c0_17 = arith.constant 0 : index
      %38 = vector.load %arg5[%c0_16, %c0_17] : memref<8x128xf32, #tpu.memory_space<vmem>>, vector<8x128xf32>
      %cst = arith.constant dense<0.000000e+00> : vector<8x128xf32>
      %39 = tpu.matmul %28, %37, %cst {dimension_numbers = #tpu.dot_dimension_numbers<[1], [0], [0], [1], [0, 0, 1, 1], [], []>} : vector<8x128xf32>, vector<128x128xf32>, vector<8x128xf32> -> vector<8x128xf32>
      %40 = arith.addf %38, %39 : vector<8x128xf32>
      %c0_18 = arith.constant 0 : index
      %c0_19 = arith.constant 0 : index
      %41 = vector.load %arg5[%c0_18, %c0_19] : memref<8x128xf32, #tpu.memory_space<vmem>>, vector<8x128xf32>
      tpu.vector_store %arg5[%c0_18, %c0_19], %40 {strides = array<i32>} : memref<8x128xf32, #tpu.memory_space<vmem>>, vector<8x128xf32>,
    } else {
    }
    %c240_i32 = arith.constant 240 : i32
    %16 = arith.cmpi slt, %0, %c240_i32 : i32
    %c128_i32_7 = arith.constant 128 : i32
    %17 = arith.addi %0, %c128_i32_7 : i32
    %c160_i32_8 = arith.constant 160 : i32
    %18 = arith.cmpi sgt, %17, %c160_i32_8 : i32
    %19 = arith.andi %16, %18 : i1
    %20 = arith.extui %19 : i1 to i32
    %c0_i32_9 = arith.constant 0 : i32
    %21 = arith.cmpi ne, %20, %c0_i32_9 : i32
    scf.if %21 {
      %c0 = arith.constant 0 : index
      %c0_13 = arith.constant 0 : index
      %28 = vector.load %arg3[%c0, %c0_13] : memref<8x128xf32, #tpu.memory_space<vmem>>, vector<8x128xf32>
      %c2 = arith.constant 2 : index
      %c0_14 = arith.constant 0 : index
      %29 = vector.load %arg2[%c2, %c0_14] : memref<4x128xi32, #tpu.memory_space<vmem>>, vector<1x128xi32>
      %c160_i32_15 = arith.constant 160 : i32
      %30 = arith.subi %c160_i32_15, %0 : i32
      %31 = vector.broadcast %30 : i32 to vector<1x128xi32>
      %32 = arith.addi %29, %31 : vector<1x128xi32>
      %33 = tpu.iota {dimensions = array<i32: 0>} : vector<128x128xi32>
      %34 = vector.broadcast %32 : vector<1x128xi32> to vector<128x128xi32>
      %35 = arith.cmpi eq, %34, %33 : vector<128x128xi32>
      %36 = arith.extui %35 : vector<128x128xi1> to vector<128x128xi32>
      %37 = arith.sitofp %36 : vector<128x128xi32> to vector<128x128xf32>
      %c0_16 = arith.constant 0 : index
      %c0_17 = arith.constant 0 : index
      %38 = vector.load %arg5[%c0_16, %c0_17] : memref<8x128xf32, #tpu.memory_space<vmem>>, vector<8x128xf32>
      %cst = arith.constant dense<0.000000e+00> : vector<8x128xf32>
      %39 = tpu.matmul %28, %37, %cst {dimension_numbers = #tpu.dot_dimension_numbers<[1], [0], [0], [1], [0, 0, 1, 1], [], []>} : vector<8x128xf32>, vector<128x128xf32>, vector<8x128xf32> -> vector<8x128xf32>
      %40 = arith.addf %38, %39 : vector<8x128xf32>
      %c0_18 = arith.constant 0 : index
      %c0_19 = arith.constant 0 : index
      %41 = vector.load %arg5[%c0_18, %c0_19] : memref<8x128xf32, #tpu.memory_space<vmem>>, vector<8x128xf32>
      tpu.vector_store %arg5[%c0_18, %c0_19], %40 {strides = array<i32>} : memref<8x128xf32, #tpu.memory_space<vmem>>, vector<8x128xf32>,
    } else {
    }
    %c340_i32 = arith.constant 340 : i32
    %22 = arith.cmpi slt, %0, %c340_i32 : i32
    %c128_i32_10 = arith.constant 128 : i32
    %23 = arith.addi %0, %c128_i32_10 : i32
    %c240_i32_11 = arith.constant 240 : i32
    %24 = arith.cmpi sgt, %23, %c240_i32_11 : i32
    %25 = arith.andi %22, %24 : i1
    %26 = arith.extui %25 : i1 to i32
    %c0_i32_12 = arith.constant 0 : i32
    %27 = arith.cmpi ne, %26, %c0_i32_12 : i32
    scf.if %27 {
      %c0 = arith.constant 0 : index
      %c0_13 = arith.constant 0 : index
      %28 = vector.load %arg3[%c0, %c0_13] : memref<8x128xf32, #tpu.memory_space<vmem>>, vector<8x128xf32>
      %c3 = arith.constant 3 : index
      %c0_14 = arith.constant 0 : index
      %29 = vector.load %arg2[%c3, %c0_14] : memref<4x128xi32, #tpu.memory_space<vmem>>, vector<1x128xi32>
      %c240_i32_15 = arith.constant 240 : i32
      %30 = arith.subi %c240_i32_15, %0 : i32
      %31 = vector.broadcast %30 : i32 to vector<1x128xi32>
      %32 = arith.addi %29, %31 : vector<1x128xi32>
      %33 = tpu.iota {dimensions = array<i32: 0>} : vector<128x128xi32>
      %34 = vector.broadcast %32 : vector<1x128xi32> to vector<128x128xi32>
      %35 = arith.cmpi eq, %34, %33 : vector<128x128xi32>
      %36 = arith.extui %35 : vector<128x128xi1> to vector<128x128xi32>
      %37 = arith.sitofp %36 : vector<128x128xi32> to vector<128x128xf32>
      %c0_16 = arith.constant 0 : index
      %c0_17 = arith.constant 0 : index
      %38 = vector.load %arg5[%c0_16, %c0_17] : memref<8x128xf32, #tpu.memory_space<vmem>>, vector<8x128xf32>
      %cst = arith.constant dense<0.000000e+00> : vector<8x128xf32>
      %39 = tpu.matmul %28, %37, %cst {dimension_numbers = #tpu.dot_dimension_numbers<[1], [0], [0], [1], [0, 0, 1, 1], [], []>} : vector<8x128xf32>, vector<128x128xf32>, vector<8x128xf32> -> vector<8x128xf32>
      %40 = arith.addf %38, %39 : vector<8x128xf32>
      %c0_18 = arith.constant 0 : index
      %c0_19 = arith.constant 0 : index
      %41 = vector.load %arg5[%c0_18, %c0_19] : memref<8x128xf32, #tpu.memory_space<vmem>>, vector<8x128xf32>
      tpu.vector_store %arg5[%c0_18, %c0_19], %40 {strides = array<i32>} : memref<8x128xf32, #tpu.memory_space<vmem>>, vector<8x128xf32>,
    } else {
    }
    return
  }
  func.func @transform_0(%arg0: i32, %arg1: i32) -> (i32, i32) {
    %c0_i32 = arith.constant 0 : i32
    %c0_i32_0 = arith.constant 0 : i32
    return %c0_i32, %arg0 : i32, i32
  }
  func.func @transform_1(%arg0: i32, %arg1: i32) -> (i32, i32) {
    %c0_i32 = arith.constant 0 : i32
    %c0_i32_0 = arith.constant 0 : i32
    return %c0_i32, %arg1 : i32, i32
  }
  func.func @transform_2(%arg0: i32, %arg1: i32) -> (i32, i32) {
    %c0_i32 = arith.constant 0 : i32
    %c0_i32_0 = arith.constant 0 : i32
    %c0_i32_1 = arith.constant 0 : i32
    return %c0_i32, %c0_i32_0 : i32, i32
  }
  func.func @transform_3(%arg0: i32, %arg1: i32) -> (i32, i32) {
    %c0_i32 = arith.constant 0 : i32
    %c0_i32_0 = arith.constant 0 : i32
    return %c0_i32, %arg0 : i32, i32
  }
}

</mosaic_0001>

<llo_original>
// kernel: tpu_custom_call.1
$region0: #{tpu_custom_call.1}
  #allocation0 [shape = 'u32[]', space=smem, size = 0x4, offset = 0x4, fixed_abs, tag = 'smem constant byte address 0x4 - core index']
  #allocation1 [shape = 'u32[144,128]{1,0:T(1,128)}', space=vmem, size = 0x12000, scoped, tag = 'internal scratch']
  %s0 = inlined_call_operand.vmem [shape: s32[4,256], index: 0, kind: input, shape index: {}]
  %s1 = inlined_call_operand.hbm [shape: f32[8,384], index: 1, kind: input, shape index: {}]
  %s2 = inlined_call_operand.vmem [shape: f32[8,1], index: 2, kind: input, shape index: {}]
  %s3 = inlined_call_operand.hbm [shape: f32[8,256], index: 3, kind: output, shape index: {}]
  %s4 = sld [smem:[#allocation0]]
  $region69: #{tpu_custom_call.1} parent=0
    _
  %s6 = ssub.s32 1, %s4
  %s7 = scalar_select 0, %s6, %s4
  $region1: #{tpu_custom_call.1} parent=0
    #allocation2 [shape = 'u8[8192]{0}', space=vmem, size = 0x2000, scoped, tag = 'input window, operand 1']
    #allocation3 [shape = 's32[2]{0}', space=sflag, size = 0x8, scoped, tag = 'scoped memory for tpu_custom_call.1']
    #allocation4 [shape = 's32[2]{0}', space=sflag, size = 0x8, scoped, tag = 'scoped memory for tpu_custom_call.1']
    #allocation5 [shape = 'u8[8192]{0}', space=vmem, size = 0x2000, scoped, tag = 'output window, operand 0']
    %8 = vsyncpa [#allocation3], 0
    %s9 = scalar_lea.sflag [#allocation3], 1
    %10 = vsyncpa %s9, 0
    %11 = vsyncpa [#allocation4], 0
    %s12 = scalar_lea.sflag [#allocation4], 1
    %13 = vsyncpa %s12, 0
    loop: start=0, step=1, limit=8
    $region2: #{tpu_custom_call.1} parent=1 // loop_pre_header
      _
    $region3: #{tpu_custom_call.1} parent=1 // loop_header
      %s15 = sphi 0, %s19
      %p16 = scmp.ge.s32.totalorder %s15, 8
      %s22 = sphi 0, %s34
      %s23 = sphi 0, %s30
      %s24 = sphi 0, %s22
      %s25 = sphi 0, %s23
      %s26 = sphi 0, %s24
      %s27 = sphi 0, %s25
      %s37 = sphi 0, %s39
      %s40 = sphi 0, %s37
      %s41 = sphi 0, %s40
      %s57 = sphi 0, %s41
      %s63 = sphi 0, %s65
      %s66 = sphi 0, %s63
      %s67 = sphi 0, %s66
      %s83 = sphi 0, %s67
      %s87 = sphi 0, %s87
      %s89 = sphi 0, %s87
      %s90 = sphi 0, %s89
      %s104 = sphi 0, %s90
      %s110 = sphi 0, %s112
      %s113 = sphi 0, %s110
      %s114 = sphi 0, %s113
      %s130 = sphi 0, %s114
    $region4: #{tpu_custom_call.1} parent=1 // loop_header_branch
      %18 = sbr.rel (%p16) target = $region8
    $region5: #{tpu_custom_call.1} parent=1 // loop_body
      %s20 = ssub.s32 %s15, 1
      %s21 = ssub.s32 %s15, 2
      %s28 = sadd.s32 1, %s23
      %p29 = scmp.ge.s32.totalorder %s28, 3
      %s30 = scalar_select %p29, 0, %s28
      %s31 = sadd.s32 1, %s22
      %s32 = scalar_select %p29, %s31, %s22
      %p33 = scmp.ge.s32.totalorder %s32, 2
      %s34 = scalar_select %p33, 0, %s32
      %s35 = ssub.s32 %s22, %s34
      %p36 = scmp.eq.s32.totalorder %s35, 0
      %s38 = sadd.s32 %s37, 1
      %s39 = scalar_select %p36, %s37, %s38
      %p42 = pneg %p36
      %p43 = scmp.eq.s32.totalorder %s15, 5
      %p44 = por %p42, %p43
      %p45 = scmp.ne.s32.totalorder %s37, %s40
      %p46 = scmp.eq.s32.totalorder %s15, 0
      %p47 = por %p45, %p46
      %p48 = scmp.ne.s32.totalorder %s37, %s40
      %p49 = scmp.eq.s32.totalorder %s20, 5
      %p50 = por %p48, %p49
      %p51 = scmp.ne.s32.totalorder %s40, %s41
      %p52 = scmp.eq.s32.totalorder %s20, 0
      %p53 = por %p51, %p52
      %p54 = scmp.ne.s32.totalorder %s40, %s41
      %p55 = scmp.eq.s32.totalorder %s21, 5
      %p56 = por %p54, %p55
      %p58 = scmp.ne.s32.totalorder %s41, %s57
      %p59 = scmp.eq.s32.totalorder %s21, 0
      %p60 = por %p58, %p59
      %s61 = ssub.s32 %s23, %s30
      %p62 = scmp.eq.s32.totalorder %s61, 0
      %s64 = sadd.s32 %s63, 1
      %s65 = scalar_select %p62, %s63, %s64
      %p68 = pneg %p62
      %p69 = scmp.eq.s32.totalorder %s15, 5
      %p70 = por %p68, %p69
      %p71 = scmp.ne.s32.totalorder %s63, %s66
      %p72 = scmp.eq.s32.totalorder %s15, 0
      %p73 = por %p71, %p72
      %p74 = scmp.ne.s32.totalorder %s63, %s66
      %p75 = scmp.eq.s32.totalorder %s20, 5
      %p76 = por %p74, %p75
      %p77 = scmp.ne.s32.totalorder %s66, %s67
      %p78 = scmp.eq.s32.totalorder %s20, 0
      %p79 = por %p77, %p78
      %p80 = scmp.ne.s32.totalorder %s66, %s67
      %p81 = scmp.eq.s32.totalorder %s21, 5
      %p82 = por %p80, %p81
      %p84 = scmp.ne.s32.totalorder %s67, %s83
      %p85 = scmp.eq.s32.totalorder %s21, 0
      %p86 = por %p84, %p85
      %s88 = sadd.s32 %s87, 1
      %p91 = scmp.eq.s32.totalorder %s15, 5
      %p92 = scmp.ne.s32.totalorder %s87, %s89
      %p93 = scmp.eq.s32.totalorder %s15, 0
      %p94 = por %p92, %p93
      %p95 = scmp.ne.s32.totalorder %s87, %s89
      %p96 = scmp.eq.s32.totalorder %s20, 5
      %p97 = por %p95, %p96
      %p98 = scmp.ne.s32.totalorder %s89, %s90
      %p99 = scmp.eq.s32.totalorder %s20, 0
      %p100 = por %p98, %p99
      %p101 = scmp.ne.s32.totalorder %s89, %s90
      %p102 = scmp.eq.s32.totalorder %s21, 5
      %p103 = por %p101, %p102
      %p105 = scmp.ne.s32.totalorder %s90, %s104
      %p106 = scmp.eq.s32.totalorder %s21, 0
      %p107 = por %p105, %p106
      %s108 = ssub.s32 %s22, %s34
      %p109 = scmp.eq.s32.totalorder %s108, 0
      %s111 = sadd.s32 %s110, 1
      %s112 = scalar_select %p109, %s110, %s111
      %p115 = pneg %p109
      %p116 = scmp.eq.s32.totalorder %s15, 5
      %p117 = por %p115, %p116
      %p118 = scmp.ne.s32.totalorder %s110, %s113
      %p119 = scmp.eq.s32.totalorder %s15, 0
      %p120 = por %p118, %p119
      %p121 = scmp.ne.s32.totalorder %s110, %s113
      %p122 = scmp.eq.s32.totalorder %s20, 5
      %p123 = por %p121, %p122
      %p124 = scmp.ne.s32.totalorder %s113, %s114
      %p125 = scmp.eq.s32.totalorder %s20, 0
      %p126 = por %p124, %p125
      %p127 = scmp.ne.s32.totalorder %s113, %s114
      %p128 = scmp.eq.s32.totalorder %s21, 5
      %p129 = por %p127, %p128
      %p131 = scmp.ne.s32.totalorder %s114, %s130
      %p132 = scmp.eq.s32.totalorder %s21, 0
      %p133 = por %p131, %p132
      %p134 = scmp.le.s32.totalorder 1, %s15
      %p135 = scmp.lt.s32.totalorder %s15, 7
      %p136 = pnand %p134, %p135
      %p137 = pneg %p136
      // Predicated region
      $region9: #{tpu_custom_call.1} parent=5 // pred_check
        _
      $region10: #{tpu_custom_call.1} parent=5 // pred_check_branch
        %139 = sbr.rel (%p136) target = $region12
      $region11: #{tpu_custom_call.1} parent=5 // pred_region
        %s140 = ssub.s32 %s15, 1
        // Predicated region
        $region13: #{tpu_custom_call.1} parent=11 // pred_check
          %p141 = pneg %p100
        $region14: #{tpu_custom_call.1} parent=11 // pred_check_branch
          %143 = sbr.rel (%p141) target = $region16
        $region15: #{tpu_custom_call.1} parent=11 // pred_region
          _
        $region16: #{tpu_custom_call.1} parent=11 // pred_fallthru
          _
      $region12: #{tpu_custom_call.1} parent=5 // pred_fallthru
        _
      %p144 = scmp.lt.s32.totalorder %s15, 6
      // Predicated region
      $region17: #{tpu_custom_call.1} parent=5 // pred_check
        %p145 = pneg %p144
      $region18: #{tpu_custom_call.1} parent=5 // pred_check_branch
        %147 = sbr.rel (%p145) target = $region20
      $region19: #{tpu_custom_call.1} parent=5 // pred_region
        // Predicated region
        $region21: #{tpu_custom_call.1} parent=19 // pred_check
          %p148 = pneg %p47
        $region22: #{tpu_custom_call.1} parent=19 // pred_check_branch
          %150 = sbr.rel (%p148) target = $region24
        $region23: #{tpu_custom_call.1} parent=19 // pred_region
          %p151 = scmp.lt.s32.totalorder %s22, 1
          %s152 = scalar_select %p151, %s22, 1
          %s153 = smul.addr %s152, 4
          %s154 = scalar_lea.vmem %s0, %s153
        $region24: #{tpu_custom_call.1} parent=19 // pred_fallthru
          _
        // Predicated region
        $region25: #{tpu_custom_call.1} parent=19 // pred_check
          %p155 = pneg %p73
        $region26: #{tpu_custom_call.1} parent=19 // pred_check_branch
          %157 = sbr.rel (%p155) target = $region28
        $region27: #{tpu_custom_call.1} parent=19 // pred_region
          %s158 = sand.u32 %s63, 1
          %s159 = scalar_lea.sflag [#allocation3], %s158
          %s160 = sand.u32 %s63, 1
          %s161 = smul.addr %s160, 8
          %s162 = scalar_lea.vmem [#allocation2], %s161
          %s164 = ssub.s32 128, 128
          %165 = vsyncadd %s159, %s164
          %s166 = smul.addr %s23, 128
          %s167 = scalar_lea.hbm %s1, %s166
          %s169 = sshll.u32 %s162, 4
          %s170 = int_to_ptr.vmem [resolvable:$true] %s169
          %172 = dma.hbm_to_vmem [thread:$0]  %s167, 128, %s170, %s159
        $region28: #{tpu_custom_call.1} parent=19 // pred_fallthru
          _
      $region20: #{tpu_custom_call.1} parent=5 // pred_fallthru
        _
      %p173 = scmp.le.s32.totalorder 1, %s15
      %p174 = scmp.lt.s32.totalorder %s15, 7
      %p175 = pnand %p173, %p174
      %p176 = pneg %p175
      // Predicated region
      $region29: #{tpu_custom_call.1} parent=5 // pred_check
        _
      $region30: #{tpu_custom_call.1} parent=5 // pred_check_branch
        %178 = sbr.rel (%p175) target = $region32
      $region31: #{tpu_custom_call.1} parent=5 // pred_region
        %s179 = ssub.s32 %s15, 1
        %s180 = sand.u32 %s66, 1
        %s181 = scalar_lea.sflag [#allocation3], %s180
        %s182 = sand.u32 %s66, 1
        %s183 = smul.addr %s182, 8
        %s184 = scalar_lea.vmem [#allocation2], %s183
        // Predicated region
        $region33: #{tpu_custom_call.1} parent=31 // pred_check
          %p185 = pneg %p79
        $region34: #{tpu_custom_call.1} parent=31 // pred_check_branch
          %187 = sbr.rel (%p185) target = $region36
        $region35: #{tpu_custom_call.1} parent=31 // pred_region
          %188 = dma.done %s181, 128
        $region36: #{tpu_custom_call.1} parent=31 // pred_fallthru
          _
        %p189 = scmp.lt.s32.totalorder %s24, 1
        %s190 = scalar_select %p189, %s24, 1
        %s191 = smul.addr %s190, 4
        %s192 = scalar_lea.vmem %s0, %s191
        %p193 = pneg %p53
        %p194 = pneg %p50
        %s195 = sand.u32 %s66, 1
        %s196 = scalar_lea.sflag [#allocation3], %s195
        %s197 = sand.u32 %s66, 1
        %s198 = smul.addr %s197, 8
        %s199 = scalar_lea.vmem [#allocation2], %s198
        %p200 = pneg %p79
        %p201 = pneg %p76
        %p202 = pneg %p100
        %p203 = pneg %p97
        %p204 = pneg %p126
        %p205 = pneg %p123
        %s206 = sand.u32 %s113, 1
        %s207 = scalar_lea.sflag [#allocation4], %s206
        %s208 = sand.u32 %s113, 1
        %s209 = smul.addr %s208, 8
        %s210 = scalar_lea.vmem [#allocation5], %s209
        %p211 = scmp.lt.s32.totalorder %s24, 1
        %s212 = scalar_select %p211, %s24, 1
        %s213 = smul.addr %s212, 4
        %s214 = scalar_lea.vmem %s0, %s213
        %s215 = smul.u32 %s25, 128
        %p216 = scmp.eq.s32.totalorder %s25, 0
        // Predicated region
        $region37: #{tpu_custom_call.1} parent=31 // pred_check
          %p217 = pneg %p216
        $region38: #{tpu_custom_call.1} parent=31 // pred_check_branch
          %219 = sbr.rel (%p217) target = $region40
        $region39: #{tpu_custom_call.1} parent=31 // pred_region
          %v220 = vld [vmem:[%s2] sm:$0xff]
          %222 = vset.pattern.permute.xlu0 0
          %223 = vperm.xlu0 %222, %v220
          %v224 = vpop.permute.xlu0 %223
          %226 = vst [vmem:[%s210] sm:$0xff] %v224
        $region40: #{tpu_custom_call.1} parent=31 // pred_fallthru
          _
        %p227 = scmp.lt.s32.totalorder %s215, 96
        %s228 = sadd.s32 %s215, 128
        %p229 = scmp.gt.s32.totalorder %s228, 0
        %p230 = pnand %p227, %p229
        %p231 = pneg %p230
        // Predicated region
        $region41: #{tpu_custom_call.1} parent=31 // pred_check
          _
        $region42: #{tpu_custom_call.1} parent=31 // pred_check_branch
          %233 = sbr.rel (%p230) target = $region44
        $region43: #{tpu_custom_call.1} parent=31 // pred_region
          %v234 = vld [vmem:[%s184] sm:$0xff]
          %v235 = vld [vmem:[%s214] sm:$0x1]
          %s236 = ssub.s32 0, %s215
          %v237 = vstv %s236
          %v238 = vadd.s32 %v235, %v237
          %v239 = vlaneseq
          %v240 = vshrl.u32 %v239, 7
          %v241 = vadd.s32 %v240, 8
          %v242 = vadd.s32 %v240, 16
          %v243 = vadd.s32 %v240, 24
          %v244 = vadd.s32 %v240, 32
          %v245 = vadd.s32 %v240, 40
          %v246 = vadd.s32 %v240, 48
          %v247 = vadd.s32 %v240, 56
          %v248 = vadd.s32 %v240, 64
          %v249 = vadd.s32 %v240, 72
          %v250 = vadd.s32 %v240, 80
          %v251 = vadd.s32 %v240, 88
          %v252 = vadd.s32 %v240, 96
          %v253 = vadd.s32 %v240, 104
          %v254 = vadd.s32 %v240, 112
          %v255 = vadd.s32 %v240, 120
          %v256 = vlaneseq
          %v257 = vshrl.u32 %v256, 7
          %v258 = vsub.s32 0, %v257
          %v259 = vrot.slane %v238, %v258
          %vm260 = vcmp.eq.s32.totalorder %v259, %v240
          %vm261 = vcmp.eq.s32.totalorder %v259, %v241
          %vm262 = vcmp.eq.s32.totalorder %v259, %v242
          %vm263 = vcmp.eq.s32.totalorder %v259, %v243
          %vm264 = vcmp.eq.s32.totalorder %v259, %v244
          %vm265 = vcmp.eq.s32.totalorder %v259, %v245
          %vm266 = vcmp.eq.s32.totalorder %v259, %v246
          %vm267 = vcmp.eq.s32.totalorder %v259, %v247
          %vm268 = vcmp.eq.s32.totalorder %v259, %v248
          %vm269 = vcmp.eq.s32.totalorder %v259, %v249
          %vm270 = vcmp.eq.s32.totalorder %v259, %v250
          %vm271 = vcmp.eq.s32.totalorder %v259, %v251
          %vm272 = vcmp.eq.s32.totalorder %v259, %v252
          %vm273 = vcmp.eq.s32.totalorder %v259, %v253
          %vm274 = vcmp.eq.s32.totalorder %v259, %v254
          %vm275 = vcmp.eq.s32.totalorder %v259, %v255
          %v276 = vsel %vm260, 1, 0
          %v277 = vsel %vm261, 1, 0
          %v278 = vsel %vm262, 1, 0
          %v279 = vsel %vm263, 1, 0
          %v280 = vsel %vm264, 1, 0
          %v281 = vsel %vm265, 1, 0
          %v282 = vsel %vm266, 1, 0
          %v283 = vsel %vm267, 1, 0
          %v284 = vsel %vm268, 1, 0
          %v285 = vsel %vm269, 1, 0
          %v286 = vsel %vm270, 1, 0
          %v287 = vsel %vm271, 1, 0
          %v288 = vsel %vm272, 1, 0
          %v289 = vsel %vm273, 1, 0
          %v290 = vsel %vm274, 1, 0
          %v291 = vsel %vm275, 1, 0
          %v292 = vcvt.s32.f32 %v276
          %v293 = vcvt.s32.f32 %v277
          %v294 = vcvt.s32.f32 %v278
          %v295 = vcvt.s32.f32 %v279
          %v296 = vcvt.s32.f32 %v280
          %v297 = vcvt.s32.f32 %v281
          %v298 = vcvt.s32.f32 %v282
          %v299 = vcvt.s32.f32 %v283
          %v300 = vcvt.s32.f32 %v284
          %v301 = vcvt.s32.f32 %v285
          %v302 = vcvt.s32.f32 %v286
          %v303 = vcvt.s32.f32 %v287
          %v304 = vcvt.s32.f32 %v288
          %v305 = vcvt.s32.f32 %v289
          %v306 = vcvt.s32.f32 %v290
          %v307 = vcvt.s32.f32 %v291
          %v308 = vld [vmem:[%s210] sm:$0xff]
          %309 = vmatprep.subr.mxu0 0.0
          %310 = vmatpush1.msra.mxu0 %v292
          %311 = vmatprep.subr.mxu0 0.0
          %312 = vmatpush1.msra.mxu0 %v293
          %313 = vmatprep.subr.mxu0 0.0
          %314 = vmatpush1.msra.mxu0 %v294
          %315 = vmatprep.subr.mxu0 0.0
          %316 = vmatpush1.msra.mxu0 %v295
          %317 = vmatprep.subr.mxu0 0.0
          %318 = vmatpush1.msra.mxu0 %v296
          %319 = vmatprep.subr.mxu0 0.0
          %320 = vmatpush1.msra.mxu0 %v297
          %321 = vmatprep.subr.mxu0 0.0
          %322 = vmatpush1.msra.mxu0 %v298
          %323 = vmatprep.subr.mxu0 0.0
          %324 = vmatpush1.msra.mxu0 %v299
          %325 = vmatprep.subr.mxu0 0.0
          %326 = vmatpush1.msra.mxu0 %v300
          %327 = vmatprep.subr.mxu0 0.0
          %328 = vmatpush1.msra.mxu0 %v301
          %329 = vmatprep.subr.mxu0 0.0
          %330 = vmatpush1.msra.mxu0 %v302
          %331 = vmatprep.subr.mxu0 0.0
          %332 = vmatpush1.msra.mxu0 %v303
          %333 = vmatprep.subr.mxu0 0.0
          %334 = vmatpush1.msra.mxu0 %v304
          %335 = vmatprep.subr.mxu0 0.0
          %336 = vmatpush1.msra.mxu0 %v305
          %337 = vmatprep.subr.mxu0 0.0
          %338 = vmatpush1.msra.mxu0 %v306
          %339 = vmatprep.subr.mxu0 0.0
          %340 = vmatpush1.msra.mxu0 %v307
          %341 = vmatprep.subr.mxu0 0.0
          %342 = vmatpush1.msra.mxu0 0.0
          %343 = vmatprep.subr.mxu0 0.0
          %344 = vmatpush1.msra.mxu0 0.0
          %345 = vmatprep.subr.mxu0 0.0
          %346 = vmatpush1.msra.mxu0 0.0
          %347 = vmatprep.subr.mxu0 0.0
          %348 = vmatpush1.msra.mxu0 0.0
          %349 = vmatprep.subr.mxu0 0.0
          %350 = vmatpush1.msra.mxu0 0.0
          %351 = vmatprep.subr.mxu0 0.0
          %352 = vmatpush1.msra.mxu0 0.0
          %353 = vmatprep.subr.mxu0 0.0
          %354 = vmatpush1.msra.mxu0 0.0
          %355 = vmatprep.subr.mxu0 0.0
          %356 = vmatpush1.msra.mxu0 0.0
          %357 = vmatprep.subr.mxu0 0.0
          %358 = vmatpush1.msra.mxu0 0.0
          %359 = vmatprep.subr.mxu0 0.0
          %360 = vmatpush1.msra.mxu0 0.0
          %361 = vmatprep.subr.mxu0 0.0
          %362 = vmatpush1.msra.mxu0 0.0
          %363 = vmatprep.subr.mxu0 0.0
          %364 = vmatpush1.msra.mxu0 0.0
          %365 = vmatprep.subr.mxu0 0.0
          %366 = vmatpush1.msra.mxu0 0.0
          %367 = vmatprep.subr.mxu0 0.0
          %368 = vmatpush1.msra.mxu0 0.0
          %369 = vmatprep.subr.mxu0 0.0
          %370 = vmatpush1.msra.mxu0 0.0
          %371 = vmatprep.subr.mxu0 0.0
          %372 = vmatpush1.msra.mxu0 0.0
          %373 = vmatprep.mubr.f32.mxu0 0.0
          %374 = vmatmul.mubr.f32.gmra.mrb[0].mxu0 %v234
          %v375 = vpop.f32.mrb[0].mxu0
          %v376 = vadd.f32 0.0, %v375
          %v377 = vpop.f32.mrb[0].mxu0
          %378 = vdwg.mxu0
          %v379 = vadd.f32 %v308, %v376
          %380 = vst [vmem:[%s210] sm:$0xff] %v379
        $region44: #{tpu_custom_call.1} parent=31 // pred_fallthru
          _
        %p381 = scmp.lt.s32.totalorder %s215, 160
        %p382 = scmp.gt.s32.totalorder %s228, 96
        %p383 = pnand %p381, %p382
        %p384 = pneg %p383
        // Predicated region
        $region45: #{tpu_custom_call.1} parent=31 // pred_check
          _
        $region46: #{tpu_custom_call.1} parent=31 // pred_check_branch
          %386 = sbr.rel (%p383) target = $region48
        $region47: #{tpu_custom_call.1} parent=31 // pred_region
          %v387 = vld [vmem:[%s184] sm:$0xff]
          %v388 = vld [vmem:[%s214 + $0x1] sm:$0x1]
          %s389 = ssub.s32 96, %s215
          %v390 = vstv %s389
          %v391 = vadd.s32 %v388, %v390
          %v392 = vlaneseq
          %v393 = vshrl.u32 %v392, 7
          %v394 = vadd.s32 %v393, 8
          %v395 = vadd.s32 %v393, 16
          %v396 = vadd.s32 %v393, 24
          %v397 = vadd.s32 %v393, 32
          %v398 = vadd.s32 %v393, 40
          %v399 = vadd.s32 %v393, 48
          %v400 = vadd.s32 %v393, 56
          %v401 = vadd.s32 %v393, 64
          %v402 = vadd.s32 %v393, 72
          %v403 = vadd.s32 %v393, 80
          %v404 = vadd.s32 %v393, 88
          %v405 = vadd.s32 %v393, 96
          %v406 = vadd.s32 %v393, 104
          %v407 = vadd.s32 %v393, 112
          %v408 = vadd.s32 %v393, 120
          %v409 = vlaneseq
          %v410 = vshrl.u32 %v409, 7
          %v411 = vsub.s32 0, %v410
          %v412 = vrot.slane %v391, %v411
          %vm413 = vcmp.eq.s32.totalorder %v412, %v393
          %vm414 = vcmp.eq.s32.totalorder %v412, %v394
          %vm415 = vcmp.eq.s32.totalorder %v412, %v395
          %vm416 = vcmp.eq.s32.totalorder %v412, %v396
          %vm417 = vcmp.eq.s32.totalorder %v412, %v397
          %vm418 = vcmp.eq.s32.totalorder %v412, %v398
          %vm419 = vcmp.eq.s32.totalorder %v412, %v399
          %vm420 = vcmp.eq.s32.totalorder %v412, %v400
          %vm421 = vcmp.eq.s32.totalorder %v412, %v401
          %vm422 = vcmp.eq.s32.totalorder %v412, %v402
          %vm423 = vcmp.eq.s32.totalorder %v412, %v403
          %vm424 = vcmp.eq.s32.totalorder %v412, %v404
          %vm425 = vcmp.eq.s32.totalorder %v412, %v405
          %vm426 = vcmp.eq.s32.totalorder %v412, %v406
          %vm427 = vcmp.eq.s32.totalorder %v412, %v407
          %vm428 = vcmp.eq.s32.totalorder %v412, %v408
          %v429 = vsel %vm413, 1, 0
          %v430 = vsel %vm414, 1, 0
          %v431 = vsel %vm415, 1, 0
          %v432 = vsel %vm416, 1, 0
          %v433 = vsel %vm417, 1, 0
          %v434 = vsel %vm418, 1, 0
          %v435 = vsel %vm419, 1, 0
          %v436 = vsel %vm420, 1, 0
          %v437 = vsel %vm421, 1, 0
          %v438 = vsel %vm422, 1, 0
          %v439 = vsel %vm423, 1, 0
          %v440 = vsel %vm424, 1, 0
          %v441 = vsel %vm425, 1, 0
          %v442 = vsel %vm426, 1, 0
          %v443 = vsel %vm427, 1, 0
          %v444 = vsel %vm428, 1, 0
          %v445 = vcvt.s32.f32 %v429
          %v446 = vcvt.s32.f32 %v430
          %v447 = vcvt.s32.f32 %v431
          %v448 = vcvt.s32.f32 %v432
          %v449 = vcvt.s32.f32 %v433
          %v450 = vcvt.s32.f32 %v434
          %v451 = vcvt.s32.f32 %v435
          %v452 = vcvt.s32.f32 %v436
          %v453 = vcvt.s32.f32 %v437
          %v454 = vcvt.s32.f32 %v438
          %v455 = vcvt.s32.f32 %v439
          %v456 = vcvt.s32.f32 %v440
          %v457 = vcvt.s32.f32 %v441
          %v458 = vcvt.s32.f32 %v442
          %v459 = vcvt.s32.f32 %v443
          %v460 = vcvt.s32.f32 %v444
          %v461 = vld [vmem:[%s210] sm:$0xff]
          %462 = vmatprep.subr.mxu0 0.0
          %463 = vmatpush1.msra.mxu0 %v445
          %464 = vmatprep.subr.mxu0 0.0
          %465 = vmatpush1.msra.mxu0 %v446
          %466 = vmatprep.subr.mxu0 0.0
          %467 = vmatpush1.msra.mxu0 %v447
          %468 = vmatprep.subr.mxu0 0.0
          %469 = vmatpush1.msra.mxu0 %v448
          %470 = vmatprep.subr.mxu0 0.0
          %471 = vmatpush1.msra.mxu0 %v449
          %472 = vmatprep.subr.mxu0 0.0
          %473 = vmatpush1.msra.mxu0 %v450
          %474 = vmatprep.subr.mxu0 0.0
          %475 = vmatpush1.msra.mxu0 %v451
          %476 = vmatprep.subr.mxu0 0.0
          %477 = vmatpush1.msra.mxu0 %v452
          %478 = vmatprep.subr.mxu0 0.0
          %479 = vmatpush1.msra.mxu0 %v453
          %480 = vmatprep.subr.mxu0 0.0
          %481 = vmatpush1.msra.mxu0 %v454
          %482 = vmatprep.subr.mxu0 0.0
          %483 = vmatpush1.msra.mxu0 %v455
          %484 = vmatprep.subr.mxu0 0.0
          %485 = vmatpush1.msra.mxu0 %v456
          %486 = vmatprep.subr.mxu0 0.0
          %487 = vmatpush1.msra.mxu0 %v457
          %488 = vmatprep.subr.mxu0 0.0
          %489 = vmatpush1.msra.mxu0 %v458
          %490 = vmatprep.subr.mxu0 0.0
          %491 = vmatpush1.msra.mxu0 %v459
          %492 = vmatprep.subr.mxu0 0.0
          %493 = vmatpush1.msra.mxu0 %v460
          %494 = vmatprep.subr.mxu0 0.0
          %495 = vmatpush1.msra.mxu0 0.0
          %496 = vmatprep.subr.mxu0 0.0
          %497 = vmatpush1.msra.mxu0 0.0
          %498 = vmatprep.subr.mxu0 0.0
          %499 = vmatpush1.msra.mxu0 0.0
          %500 = vmatprep.subr.mxu0 0.0
          %501 = vmatpush1.msra.mxu0 0.0
          %502 = vmatprep.subr.mxu0 0.0
          %503 = vmatpush1.msra.mxu0 0.0
          %504 = vmatprep.subr.mxu0 0.0
          %505 = vmatpush1.msra.mxu0 0.0
          %506 = vmatprep.subr.mxu0 0.0
          %507 = vmatpush1.msra.mxu0 0.0
          %508 = vmatprep.subr.mxu0 0.0
          %509 = vmatpush1.msra.mxu0 0.0
          %510 = vmatprep.subr.mxu0 0.0
          %511 = vmatpush1.msra.mxu0 0.0
          %512 = vmatprep.subr.mxu0 0.0
          %513 = vmatpush1.msra.mxu0 0.0
          %514 = vmatprep.subr.mxu0 0.0
          %515 = vmatpush1.msra.mxu0 0.0
          %516 = vmatprep.subr.mxu0 0.0
          %517 = vmatpush1.msra.mxu0 0.0
          %518 = vmatprep.subr.mxu0 0.0
          %519 = vmatpush1.msra.mxu0 0.0
          %520 = vmatprep.subr.mxu0 0.0
          %521 = vmatpush1.msra.mxu0 0.0
          %522 = vmatprep.subr.mxu0 0.0
          %523 = vmatpush1.msra.mxu0 0.0
          %524 = vmatprep.subr.mxu0 0.0
          %525 = vmatpush1.msra.mxu0 0.0
          %526 = vmatprep.mubr.f32.mxu0 0.0
          %527 = vmatmul.mubr.f32.gmra.mrb[0].mxu0 %v387
          %v528 = vpop.f32.mrb[0].mxu0
          %v529 = vadd.f32 0.0, %v528
          %v530 = vpop.f32.mrb[0].mxu0
          %531 = vdwg.mxu0
          %v532 = vadd.f32 %v461, %v529
          %533 = vst [vmem:[%s210] sm:$0xff] %v532
        $region48: #{tpu_custom_call.1} parent=31 // pred_fallthru
          _
        %p534 = scmp.lt.s32.totalorder %s215, 240
        %p535 = scmp.gt.s32.totalorder %s228, 160
        %p536 = pnand %p534, %p535
        %p537 = pneg %p536
        // Predicated region
        $region49: #{tpu_custom_call.1} parent=31 // pred_check
          _
        $region50: #{tpu_custom_call.1} parent=31 // pred_check_branch
          %539 = sbr.rel (%p536) target = $region52
        $region51: #{tpu_custom_call.1} parent=31 // pred_region
          %v540 = vld [vmem:[%s184] sm:$0xff]
          %v541 = vld [vmem:[%s214 + $0x2] sm:$0x1]
          %s542 = ssub.s32 160, %s215
          %v543 = vstv %s542
          %v544 = vadd.s32 %v541, %v543
          %v545 = vlaneseq
          %v546 = vshrl.u32 %v545, 7
          %v547 = vadd.s32 %v546, 8
          %v548 = vadd.s32 %v546, 16
          %v549 = vadd.s32 %v546, 24
          %v550 = vadd.s32 %v546, 32
          %v551 = vadd.s32 %v546, 40
          %v552 = vadd.s32 %v546, 48
          %v553 = vadd.s32 %v546, 56
          %v554 = vadd.s32 %v546, 64
          %v555 = vadd.s32 %v546, 72
          %v556 = vadd.s32 %v546, 80
          %v557 = vadd.s32 %v546, 88
          %v558 = vadd.s32 %v546, 96
          %v559 = vadd.s32 %v546, 104
          %v560 = vadd.s32 %v546, 112
          %v561 = vadd.s32 %v546, 120
          %v562 = vlaneseq
          %v563 = vshrl.u32 %v562, 7
          %v564 = vsub.s32 0, %v563
          %v565 = vrot.slane %v544, %v564
          %vm566 = vcmp.eq.s32.totalorder %v565, %v546
          %vm567 = vcmp.eq.s32.totalorder %v565, %v547
          %vm568 = vcmp.eq.s32.totalorder %v565, %v548
          %vm569 = vcmp.eq.s32.totalorder %v565, %v549
          %vm570 = vcmp.eq.s32.totalorder %v565, %v550
          %vm571 = vcmp.eq.s32.totalorder %v565, %v551
          %vm572 = vcmp.eq.s32.totalorder %v565, %v552
          %vm573 = vcmp.eq.s32.totalorder %v565, %v553
          %vm574 = vcmp.eq.s32.totalorder %v565, %v554
          %vm575 = vcmp.eq.s32.totalorder %v565, %v555
          %vm576 = vcmp.eq.s32.totalorder %v565, %v556
          %vm577 = vcmp.eq.s32.totalorder %v565, %v557
          %vm578 = vcmp.eq.s32.totalorder %v565, %v558
          %vm579 = vcmp.eq.s32.totalorder %v565, %v559
          %vm580 = vcmp.eq.s32.totalorder %v565, %v560
          %vm581 = vcmp.eq.s32.totalorder %v565, %v561
          %v582 = vsel %vm566, 1, 0
          %v583 = vsel %vm567, 1, 0
          %v584 = vsel %vm568, 1, 0
          %v585 = vsel %vm569, 1, 0
          %v586 = vsel %vm570, 1, 0
          %v587 = vsel %vm571, 1, 0
          %v588 = vsel %vm572, 1, 0
          %v589 = vsel %vm573, 1, 0
          %v590 = vsel %vm574, 1, 0
          %v591 = vsel %vm575, 1, 0
          %v592 = vsel %vm576, 1, 0
          %v593 = vsel %vm577, 1, 0
          %v594 = vsel %vm578, 1, 0
          %v595 = vsel %vm579, 1, 0
          %v596 = vsel %vm580, 1, 0
          %v597 = vsel %vm581, 1, 0
          %v598 = vcvt.s32.f32 %v582
          %v599 = vcvt.s32.f32 %v583
          %v600 = vcvt.s32.f32 %v584
          %v601 = vcvt.s32.f32 %v585
          %v602 = vcvt.s32.f32 %v586
          %v603 = vcvt.s32.f32 %v587
          %v604 = vcvt.s32.f32 %v588
          %v605 = vcvt.s32.f32 %v589
          %v606 = vcvt.s32.f32 %v590
          %v607 = vcvt.s32.f32 %v591
          %v608 = vcvt.s32.f32 %v592
          %v609 = vcvt.s32.f32 %v593
          %v610 = vcvt.s32.f32 %v594
          %v611 = vcvt.s32.f32 %v595
          %v612 = vcvt.s32.f32 %v596
          %v613 = vcvt.s32.f32 %v597
          %v614 = vld [vmem:[%s210] sm:$0xff]
          %615 = vmatprep.subr.mxu0 0.0
          %616 = vmatpush1.msra.mxu0 %v598
          %617 = vmatprep.subr.mxu0 0.0
          %618 = vmatpush1.msra.mxu0 %v599
          %619 = vmatprep.subr.mxu0 0.0
          %620 = vmatpush1.msra.mxu0 %v600
          %621 = vmatprep.subr.mxu0 0.0
          %622 = vmatpush1.msra.mxu0 %v601
          %623 = vmatprep.subr.mxu0 0.0
          %624 = vmatpush1.msra.mxu0 %v602
          %625 = vmatprep.subr.mxu0 0.0
          %626 = vmatpush1.msra.mxu0 %v603
          %627 = vmatprep.subr.mxu0 0.0
          %628 = vmatpush1.msra.mxu0 %v604
          %629 = vmatprep.subr.mxu0 0.0
          %630 = vmatpush1.msra.mxu0 %v605
          %631 = vmatprep.subr.mxu0 0.0
          %632 = vmatpush1.msra.mxu0 %v606
          %633 = vmatprep.subr.mxu0 0.0
          %634 = vmatpush1.msra.mxu0 %v607
          %635 = vmatprep.subr.mxu0 0.0
          %636 = vmatpush1.msra.mxu0 %v608
          %637 = vmatprep.subr.mxu0 0.0
          %638 = vmatpush1.msra.mxu0 %v609
          %639 = vmatprep.subr.mxu0 0.0
          %640 = vmatpush1.msra.mxu0 %v610
          %641 = vmatprep.subr.mxu0 0.0
          %642 = vmatpush1.msra.mxu0 %v611
          %643 = vmatprep.subr.mxu0 0.0
          %644 = vmatpush1.msra.mxu0 %v612
          %645 = vmatprep.subr.mxu0 0.0
          %646 = vmatpush1.msra.mxu0 %v613
          %647 = vmatprep.subr.mxu0 0.0
          %648 = vmatpush1.msra.mxu0 0.0
          %649 = vmatprep.subr.mxu0 0.0
          %650 = vmatpush1.msra.mxu0 0.0
          %651 = vmatprep.subr.mxu0 0.0
          %652 = vmatpush1.msra.mxu0 0.0
          %653 = vmatprep.subr.mxu0 0.0
          %654 = vmatpush1.msra.mxu0 0.0
          %655 = vmatprep.subr.mxu0 0.0
          %656 = vmatpush1.msra.mxu0 0.0
          %657 = vmatprep.subr.mxu0 0.0
          %658 = vmatpush1.msra.mxu0 0.0
          %659 = vmatprep.subr.mxu0 0.0
          %660 = vmatpush1.msra.mxu0 0.0
          %661 = vmatprep.subr.mxu0 0.0
          %662 = vmatpush1.msra.mxu0 0.0
          %663 = vmatprep.subr.mxu0 0.0
          %664 = vmatpush1.msra.mxu0 0.0
          %665 = vmatprep.subr.mxu0 0.0
          %666 = vmatpush1.msra.mxu0 0.0
          %667 = vmatprep.subr.mxu0 0.0
          %668 = vmatpush1.msra.mxu0 0.0
          %669 = vmatprep.subr.mxu0 0.0
          %670 = vmatpush1.msra.mxu0 0.0
          %671 = vmatprep.subr.mxu0 0.0
          %672 = vmatpush1.msra.mxu0 0.0
          %673 = vmatprep.subr.mxu0 0.0
          %674 = vmatpush1.msra.mxu0 0.0
          %675 = vmatprep.subr.mxu0 0.0
          %676 = vmatpush1.msra.mxu0 0.0
          %677 = vmatprep.subr.mxu0 0.0
          %678 = vmatpush1.msra.mxu0 0.0
          %679 = vmatprep.mubr.f32.mxu0 0.0
          %680 = vmatmul.mubr.f32.gmra.mrb[0].mxu0 %v540
          %v681 = vpop.f32.mrb[0].mxu0
          %v682 = vadd.f32 0.0, %v681
          %v683 = vpop.f32.mrb[0].mxu0
          %684 = vdwg.mxu0
          %v685 = vadd.f32 %v614, %v682
          %686 = vst [vmem:[%s210] sm:$0xff] %v685
        $region52: #{tpu_custom_call.1} parent=31 // pred_fallthru
          _
        %p687 = scmp.lt.s32.totalorder %s215, 340
        %p688 = scmp.gt.s32.totalorder %s228, 240
        %p689 = pnand %p687, %p688
        %p690 = pneg %p689
        // Predicated region
        $region53: #{tpu_custom_call.1} parent=31 // pred_check
          _
        $region54: #{tpu_custom_call.1} parent=31 // pred_check_branch
          %692 = sbr.rel (%p689) target = $region56
        $region55: #{tpu_custom_call.1} parent=31 // pred_region
          %v693 = vld [vmem:[%s184] sm:$0xff]
          %v694 = vld [vmem:[%s214 + $0x3] sm:$0x1]
          %s695 = ssub.s32 240, %s215
          %v696 = vstv %s695
          %v697 = vadd.s32 %v694, %v696
          %v698 = vlaneseq
          %v699 = vshrl.u32 %v698, 7
          %v700 = vadd.s32 %v699, 8
          %v701 = vadd.s32 %v699, 16
          %v702 = vadd.s32 %v699, 24
          %v703 = vadd.s32 %v699, 32
          %v704 = vadd.s32 %v699, 40
          %v705 = vadd.s32 %v699, 48
          %v706 = vadd.s32 %v699, 56
          %v707 = vadd.s32 %v699, 64
          %v708 = vadd.s32 %v699, 72
          %v709 = vadd.s32 %v699, 80
          %v710 = vadd.s32 %v699, 88
          %v711 = vadd.s32 %v699, 96
          %v712 = vadd.s32 %v699, 104
          %v713 = vadd.s32 %v699, 112
          %v714 = vadd.s32 %v699, 120
          %v715 = vlaneseq
          %v716 = vshrl.u32 %v715, 7
          %v717 = vsub.s32 0, %v716
          %v718 = vrot.slane %v697, %v717
          %vm719 = vcmp.eq.s32.totalorder %v718, %v699
          %vm720 = vcmp.eq.s32.totalorder %v718, %v700
          %vm721 = vcmp.eq.s32.totalorder %v718, %v701
          %vm722 = vcmp.eq.s32.totalorder %v718, %v702
          %vm723 = vcmp.eq.s32.totalorder %v718, %v703
          %vm724 = vcmp.eq.s32.totalorder %v718, %v704
          %vm725 = vcmp.eq.s32.totalorder %v718, %v705
          %vm726 = vcmp.eq.s32.totalorder %v718, %v706
          %vm727 = vcmp.eq.s32.totalorder %v718, %v707
          %vm728 = vcmp.eq.s32.totalorder %v718, %v708
          %vm729 = vcmp.eq.s32.totalorder %v718, %v709
          %vm730 = vcmp.eq.s32.totalorder %v718, %v710
          %vm731 = vcmp.eq.s32.totalorder %v718, %v711
          %vm732 = vcmp.eq.s32.totalorder %v718, %v712
          %vm733 = vcmp.eq.s32.totalorder %v718, %v713
          %vm734 = vcmp.eq.s32.totalorder %v718, %v714
          %v735 = vsel %vm719, 1, 0
          %v736 = vsel %vm720, 1, 0
          %v737 = vsel %vm721, 1, 0
          %v738 = vsel %vm722, 1, 0
          %v739 = vsel %vm723, 1, 0
          %v740 = vsel %vm724, 1, 0
          %v741 = vsel %vm725, 1, 0
          %v742 = vsel %vm726, 1, 0
          %v743 = vsel %vm727, 1, 0
          %v744 = vsel %vm728, 1, 0
          %v745 = vsel %vm729, 1, 0
          %v746 = vsel %vm730, 1, 0
          %v747 = vsel %vm731, 1, 0
          %v748 = vsel %vm732, 1, 0
          %v749 = vsel %vm733, 1, 0
          %v750 = vsel %vm734, 1, 0
          %v751 = vcvt.s32.f32 %v735
          %v752 = vcvt.s32.f32 %v736
          %v753 = vcvt.s32.f32 %v737
          %v754 = vcvt.s32.f32 %v738
          %v755 = vcvt.s32.f32 %v739
          %v756 = vcvt.s32.f32 %v740
          %v757 = vcvt.s32.f32 %v741
          %v758 = vcvt.s32.f32 %v742
          %v759 = vcvt.s32.f32 %v743
          %v760 = vcvt.s32.f32 %v744
          %v761 = vcvt.s32.f32 %v745
          %v762 = vcvt.s32.f32 %v746
          %v763 = vcvt.s32.f32 %v747
          %v764 = vcvt.s32.f32 %v748
          %v765 = vcvt.s32.f32 %v749
          %v766 = vcvt.s32.f32 %v750
          %v767 = vld [vmem:[%s210] sm:$0xff]
          %768 = vmatprep.subr.mxu0 0.0
          %769 = vmatpush1.msra.mxu0 %v751
          %770 = vmatprep.subr.mxu0 0.0
          %771 = vmatpush1.msra.mxu0 %v752
          %772 = vmatprep.subr.mxu0 0.0
          %773 = vmatpush1.msra.mxu0 %v753
          %774 = vmatprep.subr.mxu0 0.0
          %775 = vmatpush1.msra.mxu0 %v754
          %776 = vmatprep.subr.mxu0 0.0
          %777 = vmatpush1.msra.mxu0 %v755
          %778 = vmatprep.subr.mxu0 0.0
          %779 = vmatpush1.msra.mxu0 %v756
          %780 = vmatprep.subr.mxu0 0.0
          %781 = vmatpush1.msra.mxu0 %v757
          %782 = vmatprep.subr.mxu0 0.0
          %783 = vmatpush1.msra.mxu0 %v758
          %784 = vmatprep.subr.mxu0 0.0
          %785 = vmatpush1.msra.mxu0 %v759
          %786 = vmatprep.subr.mxu0 0.0
          %787 = vmatpush1.msra.mxu0 %v760
          %788 = vmatprep.subr.mxu0 0.0
          %789 = vmatpush1.msra.mxu0 %v761
          %790 = vmatprep.subr.mxu0 0.0
          %791 = vmatpush1.msra.mxu0 %v762
          %792 = vmatprep.subr.mxu0 0.0
          %793 = vmatpush1.msra.mxu0 %v763
          %794 = vmatprep.subr.mxu0 0.0
          %795 = vmatpush1.msra.mxu0 %v764
          %796 = vmatprep.subr.mxu0 0.0
          %797 = vmatpush1.msra.mxu0 %v765
          %798 = vmatprep.subr.mxu0 0.0
          %799 = vmatpush1.msra.mxu0 %v766
          %800 = vmatprep.subr.mxu0 0.0
          %801 = vmatpush1.msra.mxu0 0.0
          %802 = vmatprep.subr.mxu0 0.0
          %803 = vmatpush1.msra.mxu0 0.0
          %804 = vmatprep.subr.mxu0 0.0
          %805 = vmatpush1.msra.mxu0 0.0
          %806 = vmatprep.subr.mxu0 0.0
          %807 = vmatpush1.msra.mxu0 0.0
          %808 = vmatprep.subr.mxu0 0.0
          %809 = vmatpush1.msra.mxu0 0.0
          %810 = vmatprep.subr.mxu0 0.0
          %811 = vmatpush1.msra.mxu0 0.0
          %812 = vmatprep.subr.mxu0 0.0
          %813 = vmatpush1.msra.mxu0 0.0
          %814 = vmatprep.subr.mxu0 0.0
          %815 = vmatpush1.msra.mxu0 0.0
          %816 = vmatprep.subr.mxu0 0.0
          %817 = vmatpush1.msra.mxu0 0.0
          %818 = vmatprep.subr.mxu0 0.0
          %819 = vmatpush1.msra.mxu0 0.0
          %820 = vmatprep.subr.mxu0 0.0
          %821 = vmatpush1.msra.mxu0 0.0
          %822 = vmatprep.subr.mxu0 0.0
          %823 = vmatpush1.msra.mxu0 0.0
          %824 = vmatprep.subr.mxu0 0.0
          %825 = vmatpush1.msra.mxu0 0.0
          %826 = vmatprep.subr.mxu0 0.0
          %827 = vmatpush1.msra.mxu0 0.0
          %828 = vmatprep.subr.mxu0 0.0
          %829 = vmatpush1.msra.mxu0 0.0
          %830 = vmatprep.subr.mxu0 0.0
          %831 = vmatpush1.msra.mxu0 0.0
          %832 = vmatprep.mubr.f32.mxu0 0.0
          %833 = vmatmul.mubr.f32.gmra.mrb[0].mxu0 %v693
          %v834 = vpop.f32.mrb[0].mxu0
          %v835 = vadd.f32 0.0, %v834
          %v836 = vpop.f32.mrb[0].mxu0
          %837 = vdwg.mxu0
          %v838 = vadd.f32 %v767, %v835
          %839 = vst [vmem:[%s210] sm:$0xff] %v838
        $region56: #{tpu_custom_call.1} parent=31 // pred_fallthru
          _
        %s840 = sand.u32 %s113, 1
        %s841 = scalar_lea.sflag [#allocation4], %s840
        %s842 = sand.u32 %s113, 1
        %s843 = smul.addr %s842, 8
        %s844 = scalar_lea.vmem [#allocation5], %s843
        // Predicated region
        $region57: #{tpu_custom_call.1} parent=31 // pred_check
          %p845 = pneg %p123
        $region58: #{tpu_custom_call.1} parent=31 // pred_check_branch
          %847 = sbr.rel (%p845) target = $region60
        $region59: #{tpu_custom_call.1} parent=31 // pred_region
          %s849 = ssub.s32 128, 128
          %850 = vsyncadd %s841, %s849
          %s851 = smul.addr %s24, 128
          %s852 = scalar_lea.hbm %s3, %s851
          %s854 = sshll.u32 %s844, 4
          %s855 = int_to_ptr.vmem [resolvable:$true] %s854
          %857 = dma.vmem_to_hbm [thread:$0]  %s855, 128, %s852, %s841
        $region60: #{tpu_custom_call.1} parent=31 // pred_fallthru
          _
      $region32: #{tpu_custom_call.1} parent=5 // pred_fallthru
        _
      %p858 = scmp.le.s32.totalorder 2, %s15
      // Predicated region
      $region61: #{tpu_custom_call.1} parent=5 // pred_check
        %p859 = pneg %p858
      $region62: #{tpu_custom_call.1} parent=5 // pred_check_branch
        %861 = sbr.rel (%p859) target = $region64
      $region63: #{tpu_custom_call.1} parent=5 // pred_region
        %s862 = ssub.s32 %s15, 2
        // Predicated region
        $region65: #{tpu_custom_call.1} parent=63 // pred_check
          %p863 = pneg %p129
        $region66: #{tpu_custom_call.1} parent=63 // pred_check_branch
          %865 = sbr.rel (%p863) target = $region68
        $region67: #{tpu_custom_call.1} parent=63 // pred_region
          %s866 = sand.u32 %s114, 1
          %s867 = scalar_lea.sflag [#allocation4], %s866
          %s868 = sand.u32 %s114, 1
          %s869 = smul.addr %s868, 8
          %s870 = scalar_lea.vmem [#allocation5], %s869
          %871 = dma.done %s867, 128
        $region68: #{tpu_custom_call.1} parent=63 // pred_fallthru
          _
      $region64: #{tpu_custom_call.1} parent=5 // pred_fallthru
        _
    $region6: #{tpu_custom_call.1} parent=1 // loop_footer
      %s19 = sadd.s32 1, %s15
    $region7: #{tpu_custom_call.1} parent=1 // loop_footer_branch
      %14 = sbr.rel target = $region3
    $region8: #{tpu_custom_call.1} parent=1 // loop_exit
      _
    %872 = vsyncpa [#allocation3], 1
    %s873 = scalar_lea.sflag [#allocation3], 1
    %874 = vsyncpa %s873, 1
    %875 = vsyncpa [#allocation4], 1
    %s876 = scalar_lea.sflag [#allocation4], 1
    %877 = vsyncpa %s876, 1

</llo_original>
